<compile_context>
chip_gen: v7x
topology: tpu7x:2x2x1
jax: 0.10.0
libtpu: 0.0.40
codegen_flags: <defaults>
</compile_context>

<pallas_src>
import functools

import jax
import jax.numpy as jnp
from jax.experimental import pallas as pl
from jax.experimental.pallas import tpu as pltpu


def mlp_kernel(x_ref, w1_ref, b1_ref, w2_ref, b2_ref, w3_ref, b3_ref, o_ref):
    # fc1 + ReLU  (MXU matmul, f32 accumulate; bias-add / ReLU on VPU in f32)
    h1 = jnp.dot(x_ref[...], w1_ref[...], preferred_element_type=jnp.float32)
    h1 = jnp.maximum(h1 + b1_ref[...], 0.0)
    # fc2 + ReLU
    h2 = jnp.dot(h1.astype(w2_ref.dtype), w2_ref[...],
                 preferred_element_type=jnp.float32)
    h2 = jnp.maximum(h2 + b2_ref[...], 0.0)
    # fc3 (no activation); output is a lane-dense padded slab
    o_ref[...] = (jnp.dot(h2.astype(w3_ref.dtype), w3_ref[...],
                          preferred_element_type=jnp.float32) + b3_ref[...])


def _round_up(x, m):
    return ((x + m - 1) // m) * m


def _num_tensorcores():
    """Pallas-visible TensorCores per device: 2 on v7x, 1 on v5e/v6e."""
    try:
        kind = jax.devices()[0].device_kind.lower()
    except Exception:  # CPU interpret / unknown backend
        return 1
    return 2 if "v7" in kind else 1


def _pick_batch_tile(batch, num_cores):
    """Sublane-aligned batch tile.

    Single-TC chips (v5e/v6e): one fat grid step (extra steps are a serial
    loop = pure overhead).  Dual-TC v7x: two balanced halves so both cores get
    work, but only when each half still keeps >=128 MXU rows."""
    b8 = _round_up(batch, 8)
    if num_cores >= 2 and batch >= 256:
        return _round_up(pl.cdiv(batch, 2), 8)
    return min(2048, b8)  # VMEM-safe cap at flattened=256 (<12 MiB total)


@functools.partial(jax.jit, static_argnames=("n_classes",))
def model3_forward(x, params, n_classes):
    """x: (B, H, W). Returns (B, n_classes) float32 logits."""
    w1, b1, w2, b2, w3p, b3p = params
    B = x.shape[0]
    flattened = x.shape[1] * x.shape[2]
    # Row-major flatten (same as torch .view) and cast to the compute dtype up
    # front: x is the only per-step streamed input, so bf16 halves its DMA.
    x2d = x.reshape(B, flattened).astype(w1.dtype)

    n_pad = w3p.shape[1]                      # class dim rounded up to 128 lanes
    TB = _pick_batch_tile(B, _num_tensorcores())
    grid = (pl.cdiv(B, TB),)                  # ragged last tile: OOB stores masked

    weight_bytes = sum(int(p.size) * p.dtype.itemsize
                       for p in (w1, b1, w2, b2, w3p, b3p))
    cost = pl.CostEstimate(
        flops=2 * B * (flattened * 512 + 512 * 128 + 128 * n_pad),
        transcendentals=0,
        bytes_accessed=int(B * flattened * x2d.dtype.itemsize
                           + B * n_pad * 4 + weight_bytes))

    out = pl.pallas_call(
        mlp_kernel,
        out_shape=jax.ShapeDtypeStruct((B, n_pad), jnp.float32),
        grid_spec=pltpu.PrefetchScalarGridSpec(
            num_scalar_prefetch=0,
            grid=grid,
            in_specs=[
                pl.BlockSpec((TB, flattened), lambda i: (i, 0)),   # x tile (streamed)
                pl.BlockSpec((flattened, 512), lambda i: (0, 0)),  # W1 (grid-invariant)
                pl.BlockSpec((1, 512), lambda i: (0, 0)),          # b1 (f32)
                pl.BlockSpec((512, 128), lambda i: (0, 0)),        # W2
                pl.BlockSpec((1, 128), lambda i: (0, 0)),          # b2 (f32)
                pl.BlockSpec((128, n_pad), lambda i: (0, 0)),      # W3 (lane-padded)
                pl.BlockSpec((1, n_pad), lambda i: (0, 0)),        # b3 (lane-padded)
            ],
            out_specs=pl.BlockSpec((TB, n_pad), lambda i: (i, 0)),
        ),
        compiler_params=pltpu.CompilerParams(
            dimension_semantics=("parallel",)),   # shards batch across v7x TCs
        cost_estimate=cost,
    )(x2d, w1, b1, w2, b2, w3p, b3p)

    return out[:, :n_classes]


def init_params(key, flattened, n_classes, weight_dtype=jnp.bfloat16):
    """nn.Linear-style init; weights stored (in, out) so the kernel computes
    x @ W + b.  bf16 is the default (native MXU input dtype on v5e/v6e/v7x,
    half the weight DMA/VMEM); pass weight_dtype=jnp.float32 for a debug-only
    exactness path.  Biases and accumulation always stay f32."""
    k1, k2, k3, k4, k5, k6 = jax.random.split(key, 6)

    def uniform(k, shape, fan_in):
        bound = 1.0 / jnp.sqrt(float(fan_in))
        return jax.random.uniform(k, shape, jnp.float32, -bound, bound)

    w1 = uniform(k1, (flattened, 512), flattened)   # fc1.weight.T
    b1 = uniform(k2, (1, 512), flattened)           # fc1.bias
    w2 = uniform(k3, (512, 128), 512)               # fc2.weight.T
    b2 = uniform(k4, (1, 128), 512)                 # fc2.bias
    w3 = uniform(k5, (128, n_classes), 128)         # fc3.weight.T
    b3 = uniform(k6, (1, n_classes), 128)           # fc3.bias

    # Pad class dim up to a multiple of 128 lanes for an unmasked, lane-dense
    # output store (extra columns are zero and sliced off in the wrapper).
    n_pad = _round_up(n_classes, 128)
    w3p = jnp.zeros((128, n_pad), jnp.float32).at[:, :n_classes].set(w3)
    b3p = jnp.zeros((1, n_pad), jnp.float32).at[:, :n_classes].set(b3)

    params = (w1.astype(weight_dtype), b1,
              w2.astype(weight_dtype), b2,
              w3p.astype(weight_dtype), b3p)
    raw = (w1, b1, w2, b2, w3, b3)
    return params, raw


def reference_forward(x, raw_params, n_classes):
    w1, b1, w2, b2, w3, b3 = raw_params
    x2d = x.reshape(x.shape[0], -1)
    h1 = jnp.maximum(x2d @ w1 + b1, 0.0)
    h2 = jnp.maximum(h1 @ w2 + b2, 0.0)
    return h2 @ w3 + b3


if __name__ == "__main__":
    img_h, img_w, n_classes = 16, 16, 10
    key = jax.random.PRNGKey(0)
    kx1, kx2, kp = jax.random.split(key, 3)

    # --- test 1: f32 weights (debug path), small batch: exact f32 semantics ---
    batch = 8
    x = jax.random.normal(kx1, (batch, img_h, img_w), jnp.float32)
    params_f32, raw = init_params(kp, img_h * img_w, n_classes, jnp.float32)
    out = jax.block_until_ready(model3_forward(x, params_f32, n_classes))
    ref = reference_forward(x, raw, n_classes)
    assert out.shape == (batch, n_classes)
    assert jnp.allclose(out, ref, atol=1e-4, rtol=1e-4), \
        float(jnp.max(jnp.abs(out - ref)))

    # --- test 2: default bf16 weights, larger ragged batch (single fat step
    #             on v5e/v6e, two balanced halves only on v7x when B>=256) ---
    batch2 = 200
    x2 = jax.random.normal(kx2, (batch2, img_h, img_w), jnp.float32)
    params_bf16, raw2 = init_params(kp, img_h * img_w, n_classes)  # bf16 default
    out2 = jax.block_until_ready(model3_forward(x2, params_bf16, n_classes))
    ref2 = reference_forward(x2, raw2, n_classes)
    assert out2.shape == (batch2, n_classes)
    # bf16 inputs/weights, f32 accumulation -> bf16-level tolerance vs f32 ref
    assert jnp.allclose(out2, ref2, atol=5e-2, rtol=5e-2), \
        float(jnp.max(jnp.abs(out2 - ref2)))

    print("KERNEL_OK")
</pallas_src>

<mosaic_0001>
module attributes {stable_mosaic.version = 11 : i64} {
  func.func @mlp_kernel(%arg0: i32, %arg1: memref<8x256xf32, #tpu.memory_space<vmem>>, %arg2: memref<256x512xf32, #tpu.memory_space<vmem>>, %arg3: memref<1x512xf32, #tpu.memory_space<vmem>>, %arg4: memref<512x128xf32, #tpu.memory_space<vmem>>, %arg5: memref<1x128xf32, #tpu.memory_space<vmem>>, %arg6: memref<128x128xf32, #tpu.memory_space<vmem>>, %arg7: memref<1x128xf32, #tpu.memory_space<vmem>>, %arg8: memref<8x128xf32, #tpu.memory_space<vmem>>) attributes {dimension_semantics = [#tpu.dimension_semantics<parallel>], iteration_bounds = array<i64: 1>, scalar_prefetch = 0 : i64, scratch_operands = 0 : i64, tpu.core_type = #tpu.core_type<tc>, window_params = [{transform_indices = @transform_0, window_bounds = array<i64: 8, 256>}, {pipeline_mode = #tpu.pipeline_mode<synchronous>, transform_indices = @transform_1, window_bounds = array<i64: 256, 512>}, {pipeline_mode = #tpu.pipeline_mode<synchronous>, transform_indices = @transform_2, window_bounds = array<i64: 1, 512>}, {pipeline_mode = #tpu.pipeline_mode<synchronous>, transform_indices = @transform_3, window_bounds = array<i64: 512, 128>}, {pipeline_mode = #tpu.pipeline_mode<synchronous>, transform_indices = @transform_4, window_bounds = array<i64: 1, 128>}, {pipeline_mode = #tpu.pipeline_mode<synchronous>, transform_indices = @transform_5, window_bounds = array<i64: 128, 128>}, {pipeline_mode = #tpu.pipeline_mode<synchronous>, transform_indices = @transform_6, window_bounds = array<i64: 1, 128>}, {transform_indices = @transform_7, window_bounds = array<i64: 8, 128>}]} {
    %c0 = arith.constant 0 : index
    %c0_0 = arith.constant 0 : index
    %0 = vector.load %arg1[%c0, %c0_0] : memref<8x256xf32, #tpu.memory_space<vmem>>, vector<8x256xf32>
    %c0_1 = arith.constant 0 : index
    %c0_2 = arith.constant 0 : index
    %1 = vector.load %arg2[%c0_1, %c0_2] : memref<256x512xf32, #tpu.memory_space<vmem>>, vector<256x512xf32>
    %cst = arith.constant dense<0.000000e+00> : vector<8x512xf32>
    %2 = tpu.matmul %0, %1, %cst {dimension_numbers = #tpu.dot_dimension_numbers<[1], [0], [0], [1], [0, 0, 1, 1], [], []>} : vector<8x256xf32>, vector<256x512xf32>, vector<8x512xf32> -> vector<8x512xf32>
    %c0_3 = arith.constant 0 : index
    %c0_4 = arith.constant 0 : index
    %3 = vector.load %arg3[%c0_3, %c0_4] : memref<1x512xf32, #tpu.memory_space<vmem>>, vector<1x512xf32>
    %4 = vector.broadcast %3 : vector<1x512xf32> to vector<8x512xf32>
    %5 = arith.addf %2, %4 : vector<8x512xf32>
    %cst_5 = arith.constant 0.000000e+00 : f32
    %6 = vector.broadcast %cst_5 : f32 to vector<8x512xf32>
    %7 = arith.maximumf %5, %6 : vector<8x512xf32>
    %c0_6 = arith.constant 0 : index
    %c0_7 = arith.constant 0 : index
    %8 = vector.load %arg4[%c0_6, %c0_7] : memref<512x128xf32, #tpu.memory_space<vmem>>, vector<512x128xf32>
    %cst_8 = arith.constant dense<0.000000e+00> : vector<8x128xf32>
    %9 = tpu.matmul %7, %8, %cst_8 {dimension_numbers = #tpu.dot_dimension_numbers<[1], [0], [0], [1], [0, 0, 1, 1], [], []>} : vector<8x512xf32>, vector<512x128xf32>, vector<8x128xf32> -> vector<8x128xf32>
    %c0_9 = arith.constant 0 : index
    %c0_10 = arith.constant 0 : index
    %10 = vector.load %arg5[%c0_9, %c0_10] : memref<1x128xf32, #tpu.memory_space<vmem>>, vector<1x128xf32>
    %11 = vector.broadcast %10 : vector<1x128xf32> to vector<8x128xf32>
    %12 = arith.addf %9, %11 : vector<8x128xf32>
    %cst_11 = arith.constant 0.000000e+00 : f32
    %13 = vector.broadcast %cst_11 : f32 to vector<8x128xf32>
    %14 = arith.maximumf %12, %13 : vector<8x128xf32>
    %c0_12 = arith.constant 0 : index
    %c0_13 = arith.constant 0 : index
    %15 = vector.load %arg6[%c0_12, %c0_13] : memref<128x128xf32, #tpu.memory_space<vmem>>, vector<128x128xf32>
    %cst_14 = arith.constant dense<0.000000e+00> : vector<8x128xf32>
    %16 = tpu.matmul %14, %15, %cst_14 {dimension_numbers = #tpu.dot_dimension_numbers<[1], [0], [0], [1], [0, 0, 1, 1], [], []>} : vector<8x128xf32>, vector<128x128xf32>, vector<8x128xf32> -> vector<8x128xf32>
    %c0_15 = arith.constant 0 : index
    %c0_16 = arith.constant 0 : index
    %17 = vector.load %arg7[%c0_15, %c0_16] : memref<1x128xf32, #tpu.memory_space<vmem>>, vector<1x128xf32>
    %18 = vector.broadcast %17 : vector<1x128xf32> to vector<8x128xf32>
    %19 = arith.addf %16, %18 : vector<8x128xf32>
    %c0_17 = arith.constant 0 : index
    %c0_18 = arith.constant 0 : index
    %20 = vector.load %arg8[%c0_17, %c0_18] : memref<8x128xf32, #tpu.memory_space<vmem>>, vector<8x128xf32>
    tpu.vector_store %arg8[%c0_17, %c0_18], %19 {strides = array<i32>} : memref<8x128xf32, #tpu.memory_space<vmem>>, vector<8x128xf32>,
    return
  }
  func.func @transform_0(%arg0: i32) -> (i32, i32) {
    %c0_i32 = arith.constant 0 : i32
    %c0_i32_0 = arith.constant 0 : i32
    return %arg0, %c0_i32 : i32, i32
  }
  func.func @transform_1(%arg0: i32) -> (i32, i32) {
    %c0_i32 = arith.constant 0 : i32
    %c0_i32_0 = arith.constant 0 : i32
    %c0_i32_1 = arith.constant 0 : i32
    return %c0_i32, %c0_i32_0 : i32, i32
  }
  func.func @transform_2(%arg0: i32) -> (i32, i32) {
    %c0_i32 = arith.constant 0 : i32
    %c0_i32_0 = arith.constant 0 : i32
    %c0_i32_1 = arith.constant 0 : i32
    return %c0_i32, %c0_i32_0 : i32, i32
  }
  func.func @transform_3(%arg0: i32) -> (i32, i32) {
    %c0_i32 = arith.constant 0 : i32
    %c0_i32_0 = arith.constant 0 : i32
    %c0_i32_1 = arith.constant 0 : i32
    return %c0_i32, %c0_i32_0 : i32, i32
  }
  func.func @transform_4(%arg0: i32) -> (i32, i32) {
    %c0_i32 = arith.constant 0 : i32
    %c0_i32_0 = arith.constant 0 : i32
    %c0_i32_1 = arith.constant 0 : i32
    return %c0_i32, %c0_i32_0 : i32, i32
  }
  func.func @transform_5(%arg0: i32) -> (i32, i32) {
    %c0_i32 = arith.constant 0 : i32
    %c0_i32_0 = arith.constant 0 : i32
    %c0_i32_1 = arith.constant 0 : i32
    return %c0_i32, %c0_i32_0 : i32, i32
  }
  func.func @transform_6(%arg0: i32) -> (i32, i32) {
    %c0_i32 = arith.constant 0 : i32
    %c0_i32_0 = arith.constant 0 : i32
    %c0_i32_1 = arith.constant 0 : i32
    return %c0_i32, %c0_i32_0 : i32, i32
  }
  func.func @transform_7(%arg0: i32) -> (i32, i32) {
    %c0_i32 = arith.constant 0 : i32
    %c0_i32_0 = arith.constant 0 : i32
    return %arg0, %c0_i32 : i32, i32
  }
}

</mosaic_0001>

<llo_original>
// kernel: model3_forward.1
$region0: #{model3_forward.1}
  #allocation0 [shape = 'u32[]', space=smem, size = 0x4, offset = 0x4, fixed_abs, tag = 'smem constant byte address 0x4 - core index']
  #allocation1 [shape = 'u32[144,128]{1,0:T(1,128)}', space=vmem, size = 0x12000, scoped, tag = 'internal scratch']
  %s0 = inlined_call_operand.vmem [shape: f32[8,256], index: 0, kind: input, shape index: {}]
  %s1 = inlined_call_operand.hbm [shape: f32[256,512], index: 1, kind: input, shape index: {}]
  %s2 = inlined_call_operand.vmem [shape: f32[1,512], index: 2, kind: input, shape index: {}]
  %s3 = inlined_call_operand.hbm [shape: f32[512,128], index: 3, kind: input, shape index: {}]
  %s4 = inlined_call_operand.vmem [shape: f32[1,128], index: 4, kind: input, shape index: {}]
  %s5 = inlined_call_operand.vmem [shape: f32[128,128], index: 5, kind: input, shape index: {}]
  %s6 = inlined_call_operand.vmem [shape: f32[1,128], index: 6, kind: input, shape index: {}]
  %s7 = inlined_call_operand.hbm [shape: f32[8,128], index: 7, kind: output, shape index: {}]
  %s8 = sld [smem:[#allocation0]]
  $region46: #{model3_forward.1} parent=0
    _
  %s10 = ssub.s32 1, %s8
  %s11 = scalar_select 0, %s10, %s8
  $region1: #{model3_forward.1} parent=0
    #allocation2 [shape = 'u8[524288]{0}', space=vmem, size = 0x80000, scoped, tag = 'input window, operand 1, single buffered']
    #allocation3 [shape = 's32[1]{0}', space=sflag, size = 0x4, scoped, tag = 'scoped memory for model3_forward.1']
    #allocation4 [shape = 's32[1]{0}', space=sflag, size = 0x4, scoped, tag = 'scoped memory for model3_forward.1']
    #allocation5 [shape = 'u8[262144]{0}', space=vmem, size = 0x40000, scoped, tag = 'input window, operand 3, single buffered']
    #allocation6 [shape = 's32[1]{0}', space=sflag, size = 0x4, scoped, tag = 'scoped memory for model3_forward.1']
    #allocation7 [shape = 'u8[4096]{0}', space=vmem, size = 0x1000, scoped, tag = 'output window, operand 0, single buffered']
    %12 = vsyncpa [#allocation3], 0
    %13 = vsyncpa [#allocation6], 0
    %14 = vsyncpa [#allocation4], 0
    // Predicated region
    $region2: #{model3_forward.1} parent=1 // pred_check
      _
    $region3: #{model3_forward.1} parent=1 // pred_check_branch
      %16 = sbr.rel (0) target = $region5
    $region4: #{model3_forward.1} parent=1 // pred_region
      _
    $region5: #{model3_forward.1} parent=1 // pred_fallthru
      _
    // Predicated region
    $region6: #{model3_forward.1} parent=1 // pred_check
      _
    $region7: #{model3_forward.1} parent=1 // pred_check_branch
      %18 = sbr.rel (0) target = $region9
    $region8: #{model3_forward.1} parent=1 // pred_region
      %s20 = ssub.s32 16384, 16384
      %21 = vsyncadd [#allocation3], %s20
      %s22 = sshll.u32 [#allocation2], 4
      %s23 = int_to_ptr.vmem [resolvable:$true] %s22
      %28 = dma.hbm_to_vmem [thread:$0]  %s1, 16384, %s23, [#allocation3], 512, 512, 32
    $region9: #{model3_forward.1} parent=1 // pred_fallthru
      _
    // Predicated region
    $region10: #{model3_forward.1} parent=1 // pred_check
      _
    $region11: #{model3_forward.1} parent=1 // pred_check_branch
      %30 = sbr.rel (0) target = $region13
    $region12: #{model3_forward.1} parent=1 // pred_region
      _
    $region13: #{model3_forward.1} parent=1 // pred_fallthru
      _
    // Predicated region
    $region14: #{model3_forward.1} parent=1 // pred_check
      _
    $region15: #{model3_forward.1} parent=1 // pred_check_branch
      %32 = sbr.rel (0) target = $region17
    $region16: #{model3_forward.1} parent=1 // pred_region
      %s34 = ssub.s32 8192, 8192
      %35 = vsyncadd [#allocation6], %s34
      %s36 = sshll.u32 [#allocation5], 4
      %s37 = int_to_ptr.vmem [resolvable:$true] %s36
      %42 = dma.hbm_to_vmem [thread:$0]  %s3, 8192, %s37, [#allocation6], 128, 128, 8
    $region17: #{model3_forward.1} parent=1 // pred_fallthru
      _
    // Predicated region
    $region18: #{model3_forward.1} parent=1 // pred_check
      _
    $region19: #{model3_forward.1} parent=1 // pred_check_branch
      %44 = sbr.rel (0) target = $region21
    $region20: #{model3_forward.1} parent=1 // pred_region
      _
    $region21: #{model3_forward.1} parent=1 // pred_fallthru
      _
    // Predicated region
    $region22: #{model3_forward.1} parent=1 // pred_check
      _
    $region23: #{model3_forward.1} parent=1 // pred_check_branch
      %46 = sbr.rel (0) target = $region25
    $region24: #{model3_forward.1} parent=1 // pred_region
      _
    $region25: #{model3_forward.1} parent=1 // pred_fallthru
      _
    // Predicated region
    $region26: #{model3_forward.1} parent=1 // pred_check
      _
    $region27: #{model3_forward.1} parent=1 // pred_check_branch
      %48 = sbr.rel (0) target = $region29
    $region28: #{model3_forward.1} parent=1 // pred_region
      _
    $region29: #{model3_forward.1} parent=1 // pred_fallthru
      _
    // Predicated region
    $region30: #{model3_forward.1} parent=1 // pred_check
      _
    $region31: #{model3_forward.1} parent=1 // pred_check_branch
      %50 = sbr.rel (0) target = $region33
    $region32: #{model3_forward.1} parent=1 // pred_region
      %51 = dma.done [#allocation3], 16384
    $region33: #{model3_forward.1} parent=1 // pred_fallthru
      _
    // Predicated region
    $region34: #{model3_forward.1} parent=1 // pred_check
      _
    $region35: #{model3_forward.1} parent=1 // pred_check_branch
      %53 = sbr.rel (0) target = $region37
    $region36: #{model3_forward.1} parent=1 // pred_region
      %54 = dma.done [#allocation6], 8192
    $region37: #{model3_forward.1} parent=1 // pred_fallthru
      _
    %v55 = vld [vmem:[%s0] sm:$0xff]
    %v56 = vld [vmem:[%s0 + $0x8] sm:$0xff]
    %v57 = vld [vmem:[#allocation2] sm:$0xff]
    %v58 = vld [vmem:[#allocation2 + $0x8] sm:$0xff]
    %v59 = vld [vmem:[#allocation2 + $0x10] sm:$0xff]
    %v60 = vld [vmem:[#allocation2 + $0x18] sm:$0xff]
    %v61 = vld [vmem:[#allocation2 + $0x20] sm:$0xff]
    %v62 = vld [vmem:[#allocation2 + $0x28] sm:$0xff]
    %v63 = vld [vmem:[#allocation2 + $0x30] sm:$0xff]
    %v64 = vld [vmem:[#allocation2 + $0x38] sm:$0xff]
    %v65 = vld [vmem:[#allocation2 + $0x40] sm:$0xff]
    %v66 = vld [vmem:[#allocation2 + $0x48] sm:$0xff]
    %v67 = vld [vmem:[#allocation2 + $0x50] sm:$0xff]
    %v68 = vld [vmem:[#allocation2 + $0x58] sm:$0xff]
    %v69 = vld [vmem:[#allocation2 + $0x60] sm:$0xff]
    %v70 = vld [vmem:[#allocation2 + $0x68] sm:$0xff]
    %v71 = vld [vmem:[#allocation2 + $0x70] sm:$0xff]
    %v72 = vld [vmem:[#allocation2 + $0x78] sm:$0xff]
    %v73 = vld [vmem:[#allocation2 + $0x80] sm:$0xff]
    %v74 = vld [vmem:[#allocation2 + $0x88] sm:$0xff]
    %v75 = vld [vmem:[#allocation2 + $0x90] sm:$0xff]
    %v76 = vld [vmem:[#allocation2 + $0x98] sm:$0xff]
    %v77 = vld [vmem:[#allocation2 + $0xa0] sm:$0xff]
    %v78 = vld [vmem:[#allocation2 + $0xa8] sm:$0xff]
    %v79 = vld [vmem:[#allocation2 + $0xb0] sm:$0xff]
    %v80 = vld [vmem:[#allocation2 + $0xb8] sm:$0xff]
    %v81 = vld [vmem:[#allocation2 + $0xc0] sm:$0xff]
    %v82 = vld [vmem:[#allocation2 + $0xc8] sm:$0xff]
    %v83 = vld [vmem:[#allocation2 + $0xd0] sm:$0xff]
    %v84 = vld [vmem:[#allocation2 + $0xd8] sm:$0xff]
    %v85 = vld [vmem:[#allocation2 + $0xe0] sm:$0xff]
    %v86 = vld [vmem:[#allocation2 + $0xe8] sm:$0xff]
    %v87 = vld [vmem:[#allocation2 + $0xf0] sm:$0xff]
    %v88 = vld [vmem:[#allocation2 + $0xf8] sm:$0xff]
    %v89 = vld [vmem:[#allocation2 + $0x100] sm:$0xff]
    %v90 = vld [vmem:[#allocation2 + $0x108] sm:$0xff]
    %v91 = vld [vmem:[#allocation2 + $0x110] sm:$0xff]
    %v92 = vld [vmem:[#allocation2 + $0x118] sm:$0xff]
    %v93 = vld [vmem:[#allocation2 + $0x120] sm:$0xff]
    %v94 = vld [vmem:[#allocation2 + $0x128] sm:$0xff]
    %v95 = vld [vmem:[#allocation2 + $0x130] sm:$0xff]
    %v96 = vld [vmem:[#allocation2 + $0x138] sm:$0xff]
    %v97 = vld [vmem:[#allocation2 + $0x140] sm:$0xff]
    %v98 = vld [vmem:[#allocation2 + $0x148] sm:$0xff]
    %v99 = vld [vmem:[#allocation2 + $0x150] sm:$0xff]
    %v100 = vld [vmem:[#allocation2 + $0x158] sm:$0xff]
    %v101 = vld [vmem:[#allocation2 + $0x160] sm:$0xff]
    %v102 = vld [vmem:[#allocation2 + $0x168] sm:$0xff]
    %v103 = vld [vmem:[#allocation2 + $0x170] sm:$0xff]
    %v104 = vld [vmem:[#allocation2 + $0x178] sm:$0xff]
    %v105 = vld [vmem:[#allocation2 + $0x180] sm:$0xff]
    %v106 = vld [vmem:[#allocation2 + $0x188] sm:$0xff]
    %v107 = vld [vmem:[#allocation2 + $0x190] sm:$0xff]
    %v108 = vld [vmem:[#allocation2 + $0x198] sm:$0xff]
    %v109 = vld [vmem:[#allocation2 + $0x1a0] sm:$0xff]
    %v110 = vld [vmem:[#allocation2 + $0x1a8] sm:$0xff]
    %v111 = vld [vmem:[#allocation2 + $0x1b0] sm:$0xff]
    %v112 = vld [vmem:[#allocation2 + $0x1b8] sm:$0xff]
    %v113 = vld [vmem:[#allocation2 + $0x1c0] sm:$0xff]
    %v114 = vld [vmem:[#allocation2 + $0x1c8] sm:$0xff]
    %v115 = vld [vmem:[#allocation2 + $0x1d0] sm:$0xff]
    %v116 = vld [vmem:[#allocation2 + $0x1d8] sm:$0xff]
    %v117 = vld [vmem:[#allocation2 + $0x1e0] sm:$0xff]
    %v118 = vld [vmem:[#allocation2 + $0x1e8] sm:$0xff]
    %v119 = vld [vmem:[#allocation2 + $0x1f0] sm:$0xff]
    %v120 = vld [vmem:[#allocation2 + $0x1f8] sm:$0xff]
    %v121 = vld [vmem:[#allocation2 + $0x200] sm:$0xff]
    %v122 = vld [vmem:[#allocation2 + $0x208] sm:$0xff]
    %v123 = vld [vmem:[#allocation2 + $0x210] sm:$0xff]
    %v124 = vld [vmem:[#allocation2 + $0x218] sm:$0xff]
    %v125 = vld [vmem:[#allocation2 + $0x220] sm:$0xff]
    %v126 = vld [vmem:[#allocation2 + $0x228] sm:$0xff]
    %v127 = vld [vmem:[#allocation2 + $0x230] sm:$0xff]
    %v128 = vld [vmem:[#allocation2 + $0x238] sm:$0xff]
    %v129 = vld [vmem:[#allocation2 + $0x240] sm:$0xff]
    %v130 = vld [vmem:[#allocation2 + $0x248] sm:$0xff]
    %v131 = vld [vmem:[#allocation2 + $0x250] sm:$0xff]
    %v132 = vld [vmem:[#allocation2 + $0x258] sm:$0xff]
    %v133 = vld [vmem:[#allocation2 + $0x260] sm:$0xff]
    %v134 = vld [vmem:[#allocation2 + $0x268] sm:$0xff]
    %v135 = vld [vmem:[#allocation2 + $0x270] sm:$0xff]
    %v136 = vld [vmem:[#allocation2 + $0x278] sm:$0xff]
    %v137 = vld [vmem:[#allocation2 + $0x280] sm:$0xff]
    %v138 = vld [vmem:[#allocation2 + $0x288] sm:$0xff]
    %v139 = vld [vmem:[#allocation2 + $0x290] sm:$0xff]
    %v140 = vld [vmem:[#allocation2 + $0x298] sm:$0xff]
    %v141 = vld [vmem:[#allocation2 + $0x2a0] sm:$0xff]
    %v142 = vld [vmem:[#allocation2 + $0x2a8] sm:$0xff]
    %v143 = vld [vmem:[#allocation2 + $0x2b0] sm:$0xff]
    %v144 = vld [vmem:[#allocation2 + $0x2b8] sm:$0xff]
    %v145 = vld [vmem:[#allocation2 + $0x2c0] sm:$0xff]
    %v146 = vld [vmem:[#allocation2 + $0x2c8] sm:$0xff]
    %v147 = vld [vmem:[#allocation2 + $0x2d0] sm:$0xff]
    %v148 = vld [vmem:[#allocation2 + $0x2d8] sm:$0xff]
    %v149 = vld [vmem:[#allocation2 + $0x2e0] sm:$0xff]
    %v150 = vld [vmem:[#allocation2 + $0x2e8] sm:$0xff]
    %v151 = vld [vmem:[#allocation2 + $0x2f0] sm:$0xff]
    %v152 = vld [vmem:[#allocation2 + $0x2f8] sm:$0xff]
    %v153 = vld [vmem:[#allocation2 + $0x300] sm:$0xff]
    %v154 = vld [vmem:[#allocation2 + $0x308] sm:$0xff]
    %v155 = vld [vmem:[#allocation2 + $0x310] sm:$0xff]
    %v156 = vld [vmem:[#allocation2 + $0x318] sm:$0xff]
    %v157 = vld [vmem:[#allocation2 + $0x320] sm:$0xff]
    %v158 = vld [vmem:[#allocation2 + $0x328] sm:$0xff]
    %v159 = vld [vmem:[#allocation2 + $0x330] sm:$0xff]
    %v160 = vld [vmem:[#allocation2 + $0x338] sm:$0xff]
    %v161 = vld [vmem:[#allocation2 + $0x340] sm:$0xff]
    %v162 = vld [vmem:[#allocation2 + $0x348] sm:$0xff]
    %v163 = vld [vmem:[#allocation2 + $0x350] sm:$0xff]
    %v164 = vld [vmem:[#allocation2 + $0x358] sm:$0xff]
    %v165 = vld [vmem:[#allocation2 + $0x360] sm:$0xff]
    %v166 = vld [vmem:[#allocation2 + $0x368] sm:$0xff]
    %v167 = vld [vmem:[#allocation2 + $0x370] sm:$0xff]
    %v168 = vld [vmem:[#allocation2 + $0x378] sm:$0xff]
    %v169 = vld [vmem:[#allocation2 + $0x380] sm:$0xff]
    %v170 = vld [vmem:[#allocation2 + $0x388] sm:$0xff]
    %v171 = vld [vmem:[#allocation2 + $0x390] sm:$0xff]
    %v172 = vld [vmem:[#allocation2 + $0x398] sm:$0xff]
    %v173 = vld [vmem:[#allocation2 + $0x3a0] sm:$0xff]
    %v174 = vld [vmem:[#allocation2 + $0x3a8] sm:$0xff]
    %v175 = vld [vmem:[#allocation2 + $0x3b0] sm:$0xff]
    %v176 = vld [vmem:[#allocation2 + $0x3b8] sm:$0xff]
    %v177 = vld [vmem:[#allocation2 + $0x3c0] sm:$0xff]
    %v178 = vld [vmem:[#allocation2 + $0x3c8] sm:$0xff]
    %v179 = vld [vmem:[#allocation2 + $0x3d0] sm:$0xff]
    %v180 = vld [vmem:[#allocation2 + $0x3d8] sm:$0xff]
    %v181 = vld [vmem:[#allocation2 + $0x3e0] sm:$0xff]
    %v182 = vld [vmem:[#allocation2 + $0x3e8] sm:$0xff]
    %v183 = vld [vmem:[#allocation2 + $0x3f0] sm:$0xff]
    %v184 = vld [vmem:[#allocation2 + $0x3f8] sm:$0xff]
    %v185 = vld [vmem:[%s2] sm:$0xf]
    %v187 = vlaneseq
    %v188 = vshrl.u32 %v187, 7
    %v189 = vsub.s32 0, %v188
    %v190 = vrot.slane %v185, %v189
    %v191 = vlaneseq
    %v192 = vshrl.u32 %v191, 7
    %v193 = vsub.s32 1, %v192
    %v194 = vrot.slane %v185, %v193
    %v195 = vlaneseq
    %v196 = vshrl.u32 %v195, 7
    %v197 = vsub.s32 2, %v196
    %v198 = vrot.slane %v185, %v197
    %v199 = vlaneseq
    %v200 = vshrl.u32 %v199, 7
    %v201 = vsub.s32 3, %v200
    %v202 = vrot.slane %v185, %v201
    %207 = vmatprep.subr.mxu0 %v58
    %208 = vmatpush1.msra.mxu0 %v57
    %209 = vmatprep.subr.mxu0 %v62
    %210 = vmatpush1.msra.mxu0 %v61
    %211 = vmatprep.subr.mxu0 %v66
    %212 = vmatpush1.msra.mxu0 %v65
    %213 = vmatprep.subr.mxu0 %v70
    %214 = vmatpush1.msra.mxu0 %v69
    %215 = vmatprep.subr.mxu0 %v74
    %216 = vmatpush1.msra.mxu0 %v73
    %217 = vmatprep.subr.mxu0 %v78
    %218 = vmatpush1.msra.mxu0 %v77
    %219 = vmatprep.subr.mxu0 %v82
    %220 = vmatpush1.msra.mxu0 %v81
    %221 = vmatprep.subr.mxu0 %v86
    %222 = vmatpush1.msra.mxu0 %v85
    %223 = vmatprep.subr.mxu0 %v90
    %224 = vmatpush1.msra.mxu0 %v89
    %225 = vmatprep.subr.mxu0 %v94
    %226 = vmatpush1.msra.mxu0 %v93
    %227 = vmatprep.subr.mxu0 %v98
    %228 = vmatpush1.msra.mxu0 %v97
    %229 = vmatprep.subr.mxu0 %v102
    %230 = vmatpush1.msra.mxu0 %v101
    %231 = vmatprep.subr.mxu0 %v106
    %232 = vmatpush1.msra.mxu0 %v105
    %233 = vmatprep.subr.mxu0 %v110
    %234 = vmatpush1.msra.mxu0 %v109
    %235 = vmatprep.subr.mxu0 %v114
    %236 = vmatpush1.msra.mxu0 %v113
    %237 = vmatprep.subr.mxu0 %v118
    %238 = vmatpush1.msra.mxu0 %v117
    %239 = vmatprep.subr.mxu0 %v122
    %240 = vmatpush1.msra.mxu0 %v121
    %241 = vmatprep.subr.mxu0 %v126
    %242 = vmatpush1.msra.mxu0 %v125
    %243 = vmatprep.subr.mxu0 %v130
    %244 = vmatpush1.msra.mxu0 %v129
    %245 = vmatprep.subr.mxu0 %v134
    %246 = vmatpush1.msra.mxu0 %v133
    %247 = vmatprep.subr.mxu0 %v138
    %248 = vmatpush1.msra.mxu0 %v137
    %249 = vmatprep.subr.mxu0 %v142
    %250 = vmatpush1.msra.mxu0 %v141
    %251 = vmatprep.subr.mxu0 %v146
    %252 = vmatpush1.msra.mxu0 %v145
    %253 = vmatprep.subr.mxu0 %v150
    %254 = vmatpush1.msra.mxu0 %v149
    %255 = vmatprep.subr.mxu0 %v154
    %256 = vmatpush1.msra.mxu0 %v153
    %257 = vmatprep.subr.mxu0 %v158
    %258 = vmatpush1.msra.mxu0 %v157
    %259 = vmatprep.subr.mxu0 %v162
    %260 = vmatpush1.msra.mxu0 %v161
    %261 = vmatprep.subr.mxu0 %v166
    %262 = vmatpush1.msra.mxu0 %v165
    %263 = vmatprep.subr.mxu0 %v170
    %264 = vmatpush1.msra.mxu0 %v169
    %265 = vmatprep.subr.mxu0 %v174
    %266 = vmatpush1.msra.mxu0 %v173
    %267 = vmatprep.subr.mxu0 %v178
    %268 = vmatpush1.msra.mxu0 %v177
    %269 = vmatprep.subr.mxu0 %v182
    %270 = vmatpush1.msra.mxu0 %v181
    %271 = vmatprep.mubr.f32.mxu0 %v56
    %272 = vmatmul.mubr.f32.gmra.mrb[0].mxu0 %v55
    %v273 = vpop.f32.mrb[0].mxu0
    %v274 = vadd.f32 %v190, %v273
    %v275 = vpop.f32.mrb[0].mxu0
    %v276 = vadd.f32 %v194, %v275
    %277 = vdwg.mxu0
    %278 = vmatprep.subr.mxu0 %v60
    %279 = vmatpush1.msra.mxu0 %v59
    %280 = vmatprep.subr.mxu0 %v64
    %281 = vmatpush1.msra.mxu0 %v63
    %282 = vmatprep.subr.mxu0 %v68
    %283 = vmatpush1.msra.mxu0 %v67
    %284 = vmatprep.subr.mxu0 %v72
    %285 = vmatpush1.msra.mxu0 %v71
    %286 = vmatprep.subr.mxu0 %v76
    %287 = vmatpush1.msra.mxu0 %v75
    %288 = vmatprep.subr.mxu0 %v80
    %289 = vmatpush1.msra.mxu0 %v79
    %290 = vmatprep.subr.mxu0 %v84
    %291 = vmatpush1.msra.mxu0 %v83
    %292 = vmatprep.subr.mxu0 %v88
    %293 = vmatpush1.msra.mxu0 %v87
    %294 = vmatprep.subr.mxu0 %v92
    %295 = vmatpush1.msra.mxu0 %v91
    %296 = vmatprep.subr.mxu0 %v96
    %297 = vmatpush1.msra.mxu0 %v95
    %298 = vmatprep.subr.mxu0 %v100
    %299 = vmatpush1.msra.mxu0 %v99
    %300 = vmatprep.subr.mxu0 %v104
    %301 = vmatpush1.msra.mxu0 %v103
    %302 = vmatprep.subr.mxu0 %v108
    %303 = vmatpush1.msra.mxu0 %v107
    %304 = vmatprep.subr.mxu0 %v112
    %305 = vmatpush1.msra.mxu0 %v111
    %306 = vmatprep.subr.mxu0 %v116
    %307 = vmatpush1.msra.mxu0 %v115
    %308 = vmatprep.subr.mxu0 %v120
    %309 = vmatpush1.msra.mxu0 %v119
    %310 = vmatprep.subr.mxu0 %v124
    %311 = vmatpush1.msra.mxu0 %v123
    %312 = vmatprep.subr.mxu0 %v128
    %313 = vmatpush1.msra.mxu0 %v127
    %314 = vmatprep.subr.mxu0 %v132
    %315 = vmatpush1.msra.mxu0 %v131
    %316 = vmatprep.subr.mxu0 %v136
    %317 = vmatpush1.msra.mxu0 %v135
    %318 = vmatprep.subr.mxu0 %v140
    %319 = vmatpush1.msra.mxu0 %v139
    %320 = vmatprep.subr.mxu0 %v144
    %321 = vmatpush1.msra.mxu0 %v143
    %322 = vmatprep.subr.mxu0 %v148
    %323 = vmatpush1.msra.mxu0 %v147
    %324 = vmatprep.subr.mxu0 %v152
    %325 = vmatpush1.msra.mxu0 %v151
    %326 = vmatprep.subr.mxu0 %v156
    %327 = vmatpush1.msra.mxu0 %v155
    %328 = vmatprep.subr.mxu0 %v160
    %329 = vmatpush1.msra.mxu0 %v159
    %330 = vmatprep.subr.mxu0 %v164
    %331 = vmatpush1.msra.mxu0 %v163
    %332 = vmatprep.subr.mxu0 %v168
    %333 = vmatpush1.msra.mxu0 %v167
    %334 = vmatprep.subr.mxu0 %v172
    %335 = vmatpush1.msra.mxu0 %v171
    %336 = vmatprep.subr.mxu0 %v176
    %337 = vmatpush1.msra.mxu0 %v175
    %338 = vmatprep.subr.mxu0 %v180
    %339 = vmatpush1.msra.mxu0 %v179
    %340 = vmatprep.subr.mxu0 %v184
    %341 = vmatpush1.msra.mxu0 %v183
    %342 = vmatprep.mubr.f32.mxu0 %v56
    %343 = vmatmul.mubr.f32.gmra.mrb[0].mxu0 %v55
    %v344 = vpop.f32.mrb[0].mxu0
    %v345 = vadd.f32 %v198, %v344
    %v346 = vpop.f32.mrb[0].mxu0
    %v347 = vadd.f32 %v202, %v346
    %348 = vdwg.mxu0
    %v349 = vmax.f32 %v274, 0.0
    %v350 = vmax.f32 %v276, 0.0
    %v351 = vmax.f32 %v345, 0.0
    %v352 = vmax.f32 %v347, 0.0
    %v353 = vld [vmem:[#allocation5] sm:$0xff]
    %v354 = vld [vmem:[#allocation5 + $0x8] sm:$0xff]
    %v355 = vld [vmem:[#allocation5 + $0x10] sm:$0xff]
    %v356 = vld [vmem:[#allocation5 + $0x18] sm:$0xff]
    %v357 = vld [vmem:[#allocation5 + $0x20] sm:$0xff]
    %v358 = vld [vmem:[#allocation5 + $0x28] sm:$0xff]
    %v359 = vld [vmem:[#allocation5 + $0x30] sm:$0xff]
    %v360 = vld [vmem:[#allocation5 + $0x38] sm:$0xff]
    %v361 = vld [vmem:[#allocation5 + $0x40] sm:$0xff]
    %v362 = vld [vmem:[#allocation5 + $0x48] sm:$0xff]
    %v363 = vld [vmem:[#allocation5 + $0x50] sm:$0xff]
    %v364 = vld [vmem:[#allocation5 + $0x58] sm:$0xff]
    %v365 = vld [vmem:[#allocation5 + $0x60] sm:$0xff]
    %v366 = vld [vmem:[#allocation5 + $0x68] sm:$0xff]
    %v367 = vld [vmem:[#allocation5 + $0x70] sm:$0xff]
    %v368 = vld [vmem:[#allocation5 + $0x78] sm:$0xff]
    %v369 = vld [vmem:[#allocation5 + $0x80] sm:$0xff]
    %v370 = vld [vmem:[#allocation5 + $0x88] sm:$0xff]
    %v371 = vld [vmem:[#allocation5 + $0x90] sm:$0xff]
    %v372 = vld [vmem:[#allocation5 + $0x98] sm:$0xff]
    %v373 = vld [vmem:[#allocation5 + $0xa0] sm:$0xff]
    %v374 = vld [vmem:[#allocation5 + $0xa8] sm:$0xff]
    %v375 = vld [vmem:[#allocation5 + $0xb0] sm:$0xff]
    %v376 = vld [vmem:[#allocation5 + $0xb8] sm:$0xff]
    %v377 = vld [vmem:[#allocation5 + $0xc0] sm:$0xff]
    %v378 = vld [vmem:[#allocation5 + $0xc8] sm:$0xff]
    %v379 = vld [vmem:[#allocation5 + $0xd0] sm:$0xff]
    %v380 = vld [vmem:[#allocation5 + $0xd8] sm:$0xff]
    %v381 = vld [vmem:[#allocation5 + $0xe0] sm:$0xff]
    %v382 = vld [vmem:[#allocation5 + $0xe8] sm:$0xff]
    %v383 = vld [vmem:[#allocation5 + $0xf0] sm:$0xff]
    %v384 = vld [vmem:[#allocation5 + $0xf8] sm:$0xff]
    %v385 = vld [vmem:[#allocation5 + $0x100] sm:$0xff]
    %v386 = vld [vmem:[#allocation5 + $0x108] sm:$0xff]
    %v387 = vld [vmem:[#allocation5 + $0x110] sm:$0xff]
    %v388 = vld [vmem:[#allocation5 + $0x118] sm:$0xff]
    %v389 = vld [vmem:[#allocation5 + $0x120] sm:$0xff]
    %v390 = vld [vmem:[#allocation5 + $0x128] sm:$0xff]
    %v391 = vld [vmem:[#allocation5 + $0x130] sm:$0xff]
    %v392 = vld [vmem:[#allocation5 + $0x138] sm:$0xff]
    %v393 = vld [vmem:[#allocation5 + $0x140] sm:$0xff]
    %v394 = vld [vmem:[#allocation5 + $0x148] sm:$0xff]
    %v395 = vld [vmem:[#allocation5 + $0x150] sm:$0xff]
    %v396 = vld [vmem:[#allocation5 + $0x158] sm:$0xff]
    %v397 = vld [vmem:[#allocation5 + $0x160] sm:$0xff]
    %v398 = vld [vmem:[#allocation5 + $0x168] sm:$0xff]
    %v399 = vld [vmem:[#allocation5 + $0x170] sm:$0xff]
    %v400 = vld [vmem:[#allocation5 + $0x178] sm:$0xff]
    %v401 = vld [vmem:[#allocation5 + $0x180] sm:$0xff]
    %v402 = vld [vmem:[#allocation5 + $0x188] sm:$0xff]
    %v403 = vld [vmem:[#allocation5 + $0x190] sm:$0xff]
    %v404 = vld [vmem:[#allocation5 + $0x198] sm:$0xff]
    %v405 = vld [vmem:[#allocation5 + $0x1a0] sm:$0xff]
    %v406 = vld [vmem:[#allocation5 + $0x1a8] sm:$0xff]
    %v407 = vld [vmem:[#allocation5 + $0x1b0] sm:$0xff]
    %v408 = vld [vmem:[#allocation5 + $0x1b8] sm:$0xff]
    %v409 = vld [vmem:[#allocation5 + $0x1c0] sm:$0xff]
    %v410 = vld [vmem:[#allocation5 + $0x1c8] sm:$0xff]
    %v411 = vld [vmem:[#allocation5 + $0x1d0] sm:$0xff]
    %v412 = vld [vmem:[#allocation5 + $0x1d8] sm:$0xff]
    %v413 = vld [vmem:[#allocation5 + $0x1e0] sm:$0xff]
    %v414 = vld [vmem:[#allocation5 + $0x1e8] sm:$0xff]
    %v415 = vld [vmem:[#allocation5 + $0x1f0] sm:$0xff]
    %v416 = vld [vmem:[#allocation5 + $0x1f8] sm:$0xff]
    %v417 = vld [vmem:[%s4] sm:$0x1]
    %v419 = vlaneseq
    %v420 = vshrl.u32 %v419, 7
    %v421 = vsub.s32 0, %v420
    %v422 = vrot.slane %v417, %v421
    %424 = vmatprep.subr.mxu0 0.0
    %425 = vmatpush1.msra.mxu0 %v353
    %426 = vmatprep.subr.mxu0 0.0
    %427 = vmatpush1.msra.mxu0 %v354
    %428 = vmatprep.subr.mxu0 0.0
    %429 = vmatpush1.msra.mxu0 %v355
    %430 = vmatprep.subr.mxu0 0.0
    %431 = vmatpush1.msra.mxu0 %v356
    %432 = vmatprep.subr.mxu0 0.0
    %433 = vmatpush1.msra.mxu0 %v357
    %434 = vmatprep.subr.mxu0 0.0
    %435 = vmatpush1.msra.mxu0 %v358
    %436 = vmatprep.subr.mxu0 0.0
    %437 = vmatpush1.msra.mxu0 %v359
    %438 = vmatprep.subr.mxu0 0.0
    %439 = vmatpush1.msra.mxu0 %v360
    %440 = vmatprep.subr.mxu0 0.0
    %441 = vmatpush1.msra.mxu0 %v361
    %442 = vmatprep.subr.mxu0 0.0
    %443 = vmatpush1.msra.mxu0 %v362
    %444 = vmatprep.subr.mxu0 0.0
    %445 = vmatpush1.msra.mxu0 %v363
    %446 = vmatprep.subr.mxu0 0.0
    %447 = vmatpush1.msra.mxu0 %v364
    %448 = vmatprep.subr.mxu0 0.0
    %449 = vmatpush1.msra.mxu0 %v365
    %450 = vmatprep.subr.mxu0 0.0
    %451 = vmatpush1.msra.mxu0 %v366
    %452 = vmatprep.subr.mxu0 0.0
    %453 = vmatpush1.msra.mxu0 %v367
    %454 = vmatprep.subr.mxu0 0.0
    %455 = vmatpush1.msra.mxu0 %v368
    %456 = vmatprep.subr.mxu0 0.0
    %457 = vmatpush1.msra.mxu0 %v369
    %458 = vmatprep.subr.mxu0 0.0
    %459 = vmatpush1.msra.mxu0 %v370
    %460 = vmatprep.subr.mxu0 0.0
    %461 = vmatpush1.msra.mxu0 %v371
    %462 = vmatprep.subr.mxu0 0.0
    %463 = vmatpush1.msra.mxu0 %v372
    %464 = vmatprep.subr.mxu0 0.0
    %465 = vmatpush1.msra.mxu0 %v373
    %466 = vmatprep.subr.mxu0 0.0
    %467 = vmatpush1.msra.mxu0 %v374
    %468 = vmatprep.subr.mxu0 0.0
    %469 = vmatpush1.msra.mxu0 %v375
    %470 = vmatprep.subr.mxu0 0.0
    %471 = vmatpush1.msra.mxu0 %v376
    %472 = vmatprep.subr.mxu0 0.0
    %473 = vmatpush1.msra.mxu0 %v377
    %474 = vmatprep.subr.mxu0 0.0
    %475 = vmatpush1.msra.mxu0 %v378
    %476 = vmatprep.subr.mxu0 0.0
    %477 = vmatpush1.msra.mxu0 %v379
    %478 = vmatprep.subr.mxu0 0.0
    %479 = vmatpush1.msra.mxu0 %v380
    %480 = vmatprep.subr.mxu0 0.0
    %481 = vmatpush1.msra.mxu0 %v381
    %482 = vmatprep.subr.mxu0 0.0
    %483 = vmatpush1.msra.mxu0 %v382
    %484 = vmatprep.subr.mxu0 0.0
    %485 = vmatpush1.msra.mxu0 %v383
    %486 = vmatprep.subr.mxu0 0.0
    %487 = vmatpush1.msra.mxu0 %v384
    %488 = vmatprep.mubr.f32.mxu0 %v350
    %489 = vmatmul.mubr.f32.gmra.mrb[0].mxu0 %v349
    %v490 = vpop.f32.mrb[0].mxu0
    %v491 = vadd.f32 %v422, %v490
    %v492 = vpop.f32.mrb[0].mxu0
    %493 = vdwg.mxu0
    %494 = vmatprep.subr.mxu0 0.0
    %495 = vmatpush1.msra.mxu0 %v385
    %496 = vmatprep.subr.mxu0 0.0
    %497 = vmatpush1.msra.mxu0 %v386
    %498 = vmatprep.subr.mxu0 0.0
    %499 = vmatpush1.msra.mxu0 %v387
    %500 = vmatprep.subr.mxu0 0.0
    %501 = vmatpush1.msra.mxu0 %v388
    %502 = vmatprep.subr.mxu0 0.0
    %503 = vmatpush1.msra.mxu0 %v389
    %504 = vmatprep.subr.mxu0 0.0
    %505 = vmatpush1.msra.mxu0 %v390
    %506 = vmatprep.subr.mxu0 0.0
    %507 = vmatpush1.msra.mxu0 %v391
    %508 = vmatprep.subr.mxu0 0.0
    %509 = vmatpush1.msra.mxu0 %v392
    %510 = vmatprep.subr.mxu0 0.0
    %511 = vmatpush1.msra.mxu0 %v393
    %512 = vmatprep.subr.mxu0 0.0
    %513 = vmatpush1.msra.mxu0 %v394
    %514 = vmatprep.subr.mxu0 0.0
    %515 = vmatpush1.msra.mxu0 %v395
    %516 = vmatprep.subr.mxu0 0.0
    %517 = vmatpush1.msra.mxu0 %v396
    %518 = vmatprep.subr.mxu0 0.0
    %519 = vmatpush1.msra.mxu0 %v397
    %520 = vmatprep.subr.mxu0 0.0
    %521 = vmatpush1.msra.mxu0 %v398
    %522 = vmatprep.subr.mxu0 0.0
    %523 = vmatpush1.msra.mxu0 %v399
    %524 = vmatprep.subr.mxu0 0.0
    %525 = vmatpush1.msra.mxu0 %v400
    %526 = vmatprep.subr.mxu0 0.0
    %527 = vmatpush1.msra.mxu0 %v401
    %528 = vmatprep.subr.mxu0 0.0
    %529 = vmatpush1.msra.mxu0 %v402
    %530 = vmatprep.subr.mxu0 0.0
    %531 = vmatpush1.msra.mxu0 %v403
    %532 = vmatprep.subr.mxu0 0.0
    %533 = vmatpush1.msra.mxu0 %v404
    %534 = vmatprep.subr.mxu0 0.0
    %535 = vmatpush1.msra.mxu0 %v405
    %536 = vmatprep.subr.mxu0 0.0
    %537 = vmatpush1.msra.mxu0 %v406
    %538 = vmatprep.subr.mxu0 0.0
    %539 = vmatpush1.msra.mxu0 %v407
    %540 = vmatprep.subr.mxu0 0.0
    %541 = vmatpush1.msra.mxu0 %v408
    %542 = vmatprep.subr.mxu0 0.0
    %543 = vmatpush1.msra.mxu0 %v409
    %544 = vmatprep.subr.mxu0 0.0
    %545 = vmatpush1.msra.mxu0 %v410
    %546 = vmatprep.subr.mxu0 0.0
    %547 = vmatpush1.msra.mxu0 %v411
    %548 = vmatprep.subr.mxu0 0.0
    %549 = vmatpush1.msra.mxu0 %v412
    %550 = vmatprep.subr.mxu0 0.0
    %551 = vmatpush1.msra.mxu0 %v413
    %552 = vmatprep.subr.mxu0 0.0
    %553 = vmatpush1.msra.mxu0 %v414
    %554 = vmatprep.subr.mxu0 0.0
    %555 = vmatpush1.msra.mxu0 %v415
    %556 = vmatprep.subr.mxu0 0.0
    %557 = vmatpush1.msra.mxu0 %v416
    %558 = vmatprep.mubr.f32.mxu0 %v352
    %559 = vmatmul.mubr.f32.gmra.mrb[0].mxu0 %v351
    %v560 = vpop.f32.mrb[0].mxu0
    %v561 = vadd.f32 %v491, %v560
    %v562 = vpop.f32.mrb[0].mxu0
    %563 = vdwg.mxu0
    %v564 = vmax.f32 %v561, 0.0
    %v565 = vld [vmem:[%s5] sm:$0xff]
    %v566 = vld [vmem:[%s5 + $0x8] sm:$0xff]
    %v567 = vld [vmem:[%s5 + $0x10] sm:$0xff]
    %v568 = vld [vmem:[%s5 + $0x18] sm:$0xff]
    %v569 = vld [vmem:[%s5 + $0x20] sm:$0xff]
    %v570 = vld [vmem:[%s5 + $0x28] sm:$0xff]
    %v571 = vld [vmem:[%s5 + $0x30] sm:$0xff]
    %v572 = vld [vmem:[%s5 + $0x38] sm:$0xff]
    %v573 = vld [vmem:[%s5 + $0x40] sm:$0xff]
    %v574 = vld [vmem:[%s5 + $0x48] sm:$0xff]
    %v575 = vld [vmem:[%s5 + $0x50] sm:$0xff]
    %v576 = vld [vmem:[%s5 + $0x58] sm:$0xff]
    %v577 = vld [vmem:[%s5 + $0x60] sm:$0xff]
    %v578 = vld [vmem:[%s5 + $0x68] sm:$0xff]
    %v579 = vld [vmem:[%s5 + $0x70] sm:$0xff]
    %v580 = vld [vmem:[%s5 + $0x78] sm:$0xff]
    %v581 = vld [vmem:[%s6] sm:$0x1]
    %v583 = vlaneseq
    %v584 = vshrl.u32 %v583, 7
    %v585 = vsub.s32 0, %v584
    %v586 = vrot.slane %v581, %v585
    %588 = vmatprep.subr.mxu0 0.0
    %589 = vmatpush1.msra.mxu0 %v565
    %590 = vmatprep.subr.mxu0 0.0
    %591 = vmatpush1.msra.mxu0 %v566
    %592 = vmatprep.subr.mxu0 0.0
    %593 = vmatpush1.msra.mxu0 %v567
    %594 = vmatprep.subr.mxu0 0.0
    %595 = vmatpush1.msra.mxu0 %v568
    %596 = vmatprep.subr.mxu0 0.0
    %597 = vmatpush1.msra.mxu0 %v569
    %598 = vmatprep.subr.mxu0 0.0
    %599 = vmatpush1.msra.mxu0 %v570
    %600 = vmatprep.subr.mxu0 0.0
    %601 = vmatpush1.msra.mxu0 %v571
    %602 = vmatprep.subr.mxu0 0.0
    %603 = vmatpush1.msra.mxu0 %v572
    %604 = vmatprep.subr.mxu0 0.0
    %605 = vmatpush1.msra.mxu0 %v573
    %606 = vmatprep.subr.mxu0 0.0
    %607 = vmatpush1.msra.mxu0 %v574
    %608 = vmatprep.subr.mxu0 0.0
    %609 = vmatpush1.msra.mxu0 %v575
    %610 = vmatprep.subr.mxu0 0.0
    %611 = vmatpush1.msra.mxu0 %v576
    %612 = vmatprep.subr.mxu0 0.0
    %613 = vmatpush1.msra.mxu0 %v577
    %614 = vmatprep.subr.mxu0 0.0
    %615 = vmatpush1.msra.mxu0 %v578
    %616 = vmatprep.subr.mxu0 0.0
    %617 = vmatpush1.msra.mxu0 %v579
    %618 = vmatprep.subr.mxu0 0.0
    %619 = vmatpush1.msra.mxu0 %v580
    %620 = vmatprep.subr.mxu0 0.0
    %621 = vmatpush1.msra.mxu0 0.0
    %622 = vmatprep.subr.mxu0 0.0
    %623 = vmatpush1.msra.mxu0 0.0
    %624 = vmatprep.subr.mxu0 0.0
    %625 = vmatpush1.msra.mxu0 0.0
    %626 = vmatprep.subr.mxu0 0.0
    %627 = vmatpush1.msra.mxu0 0.0
    %628 = vmatprep.subr.mxu0 0.0
    %629 = vmatpush1.msra.mxu0 0.0
    %630 = vmatprep.subr.mxu0 0.0
    %631 = vmatpush1.msra.mxu0 0.0
    %632 = vmatprep.subr.mxu0 0.0
    %633 = vmatpush1.msra.mxu0 0.0
    %634 = vmatprep.subr.mxu0 0.0
    %635 = vmatpush1.msra.mxu0 0.0
    %636 = vmatprep.subr.mxu0 0.0
    %637 = vmatpush1.msra.mxu0 0.0
    %638 = vmatprep.subr.mxu0 0.0
    %639 = vmatpush1.msra.mxu0 0.0
    %640 = vmatprep.subr.mxu0 0.0
    %641 = vmatpush1.msra.mxu0 0.0
    %642 = vmatprep.subr.mxu0 0.0
    %643 = vmatpush1.msra.mxu0 0.0
    %644 = vmatprep.subr.mxu0 0.0
    %645 = vmatpush1.msra.mxu0 0.0
    %646 = vmatprep.subr.mxu0 0.0
    %647 = vmatpush1.msra.mxu0 0.0
    %648 = vmatprep.subr.mxu0 0.0
    %649 = vmatpush1.msra.mxu0 0.0
    %650 = vmatprep.subr.mxu0 0.0
    %651 = vmatpush1.msra.mxu0 0.0
    %652 = vmatprep.mubr.f32.mxu0 0.0
    %653 = vmatmul.mubr.f32.gmra.mrb[0].mxu0 %v564
    %v654 = vpop.f32.mrb[0].mxu0
    %v655 = vadd.f32 %v586, %v654
    %v656 = vpop.f32.mrb[0].mxu0
    %657 = vdwg.mxu0
    %658 = vst [vmem:[#allocation7] sm:$0xff] %v655
    // Predicated region
    $region38: #{model3_forward.1} parent=1 // pred_check
      _
    $region39: #{model3_forward.1} parent=1 // pred_check_branch
      %660 = sbr.rel (0) target = $region41
    $region40: #{model3_forward.1} parent=1 // pred_region
      %s662 = ssub.s32 128, 128
      %663 = vsyncadd [#allocation4], %s662
      %s665 = sshll.u32 [#allocation7], 4
      %s666 = int_to_ptr.vmem [resolvable:$true] %s665
      %668 = dma.vmem_to_hbm [thread:$0]  %s666, 128, %s7, [#allocation4]
    $region41: #{model3_forward.1} parent=1 // pred_fallthru
      _
    // Predicated region
    $region42: #{model3_forward.1} parent=1 // pred_check
      _
    $region43: #{model3_forward.1} parent=1 // pred_check_branch
      %670 = sbr.rel (0) target = $region45
    $region44: #{model3_forward.1} parent=1 // pred_region
      %671 = dma.done [#allocation4], 128
    $region45: #{model3_forward.1} parent=1 // pred_fallthru
      _
    %672 = vsyncpa [#allocation3], 1
    %673 = vsyncpa [#allocation6], 1
    %674 = vsyncpa [#allocation4], 1

</llo_original>
